<compile_context>
chip_gen: v7x
topology: tpu7x:2x2x1
jax: 0.10.0
libtpu: 0.0.40
codegen_flags: <defaults>
</compile_context>

<pallas_src>
import math
import functools

import jax
import jax.numpy as jnp
from jax import lax
from jax.experimental import pallas as pl
from jax.experimental.pallas import tpu as pltpu


def _attn_kernel(x_ref, w_ref, b_ref, mask_ref, ctx_ref, *rest,
                 num_heads, head_dim, hidden, q_tile, compute_dtype,
                 approx_recip):
    # x_ref:    (1, S, H)   full hidden states for this batch element
    # w_ref:    (H, 3H)     fused, pre-transposed, Q-pre-scaled QKV weight
    # b_ref:    (1, 3H)     fused (Q-pre-scaled) QKV bias, f32
    # mask_ref: (1, 1, S)   additive per-key attention mask, f32
    # ctx_ref:  (1, tq, H)  lane-dense context output tile
    # rest:     [probs_ref (1, nH, tq, S)]? + [qkv_scratch (S, 3H)]
    qkv_ref = rest[-1]
    probs_ref = rest[0] if len(rest) == 2 else None

    t = pl.program_id(1)

    # Fused QKV projection, computed once per batch element (query tile 0)
    # and reused by all query tiles via the persistent VMEM scratch.
    @pl.when(t == 0)
    def _project():
        x = x_ref[0]                                   # (S, H)
        if compute_dtype is not None:
            x = x.astype(compute_dtype)
        qkv = jnp.dot(x, w_ref[...],
                      preferred_element_type=jnp.float32)          # (S, 3H) f32
        qkv = qkv + b_ref[...]          # scale already folded into the Q part
        qkv_ref[...] = qkv.astype(qkv_ref.dtype)

    mask = mask_ref[0]                  # (1, S) f32, broadcasts over query rows
    q_start = pl.multiple_of(t * q_tile, q_tile)

    # Static head loop with per-head stores (short live ranges, no epilogue
    # concat/stack burst).  Dropout is identity in eval mode; head_mask=None.
    for h in range(num_heads):
        lo = h * head_dim
        hi = lo + head_dim
        q = qkv_ref[pl.ds(q_start, q_tile), lo:hi]                 # (tq, D)
        k = qkv_ref[:, hidden + lo:hidden + hi]                    # (S, D)
        v = qkv_ref[:, 2 * hidden + lo:2 * hidden + hi]            # (S, D)

        # scores = q @ k^T (no in-kernel transpose: contract dim 1 with dim 1).
        scores = lax.dot_general(q, k, (((1,), (1,)), ((), ())),
                                 preferred_element_type=jnp.float32)  # (tq, S)
        scores = scores + mask

        # Numerically stable softmax in f32; reciprocal on the EUP.
        m = jnp.max(scores, axis=-1, keepdims=True)
        e = jnp.exp(scores - m)
        denom = jnp.sum(e, axis=-1, keepdims=True)
        probs = e * pl.reciprocal(denom, approx=approx_recip)         # (tq, S)

        if probs_ref is not None:
            probs_ref[0, h] = probs.astype(probs_ref.dtype)

        p = probs if compute_dtype is None else probs.astype(compute_dtype)
        ctx = jnp.dot(p, v, preferred_element_type=jnp.float32)       # (tq, D)
        ctx_ref[0, :, lo:hi] = ctx.astype(ctx_ref.dtype)


def _pick_q_tile(seq_len, target=256):
    """Largest query-tile <= target that divides S and is a multiple of 8
    (or the full sequence, which always satisfies the (8,128) rule)."""
    if seq_len <= target:
        return seq_len
    for tq in range(target, 7, -1):
        if seq_len % tq == 0 and tq % 8 == 0:
            return tq
    return seq_len


def _vmem_limit_bytes():
    """Generation-aware VMEM limit: ~3/4 of per-core capacity
    (~48 MiB on v7x, ~96 MiB on v5e/v6e); fallback 32 MiB."""
    try:
        info = pltpu.get_tpu_info()
        cap = int(getattr(info, "vmem_capacity_bytes", 0) or 0)
        if cap > 0:
            return cap * 3 // 4
    except Exception:
        pass
    return 32 * 1024 * 1024


def bert_self_attention(hidden_states, wq, bq, wk, bk, wv, bv, attention_mask,
                        num_heads, *, output_attentions=False,
                        compute_dtype=jnp.bfloat16, approx_reciprocal=True,
                        q_tile=None):
    """Pallas implementation of BertSelfAttention.forward (self-attn path).

    hidden_states: [B, S, H]
    wq/wk/wv:      [H, H]   (PyTorch nn.Linear weight, out x in)
    bq/bk/bv:      [H]
    attention_mask:[B, 1, 1, S] additive per-key mask (or None)
    Returns (context [B,S,H],) or (context, attention_probs [B,nH,S,S]).
    """
    B, S, H = hidden_states.shape
    nH = num_heads
    D = H // nH
    dtype = hidden_states.dtype
    scale = 1.0 / math.sqrt(D)

    # Fuse & pre-transpose the projections (y = x @ W^T + b -> x @ Wt + b) and
    # fold the 1/sqrt(D) attention scale into the Q columns (weight AND bias).
    w_qkv = jnp.concatenate([wq.T * scale, wk.T, wv.T], axis=1)   # (H, 3H)
    b_qkv = jnp.concatenate([bq * scale, bk, bv],
                            axis=0).reshape(1, 3 * H).astype(jnp.float32)
    if compute_dtype is not None:
        w_qkv = w_qkv.astype(compute_dtype)

    if attention_mask is None:
        mask = jnp.zeros((B, 1, S), dtype=jnp.float32)
    else:
        if attention_mask.shape != (B, 1, 1, S):
            raise ValueError(
                "attention_mask must be an additive per-key mask of shape "
                f"[B, 1, 1, S]; got {attention_mask.shape}")
        mask = attention_mask.reshape(B, 1, S).astype(jnp.float32)

    tq = _pick_q_tile(S) if q_tile is None else q_tile
    assert S % tq == 0 and (tq == S or tq % 8 == 0)
    n_q_tiles = S // tq
    scratch_dtype = jnp.float32 if compute_dtype is None else compute_dtype

    x_spec = pl.BlockSpec((1, S, H), lambda b, t: (b, 0, 0))     # constant in t
    w_spec = pl.BlockSpec((H, 3 * H), lambda b, t: (0, 0))       # resident
    b_spec = pl.BlockSpec((1, 3 * H), lambda b, t: (0, 0))       # resident
    m_spec = pl.BlockSpec((1, 1, S), lambda b, t: (b, 0, 0))
    ctx_spec = pl.BlockSpec((1, tq, H), lambda b, t: (b, t, 0))  # lane-dense

    out_shapes = [jax.ShapeDtypeStruct((B, S, H), dtype)]
    out_specs = [ctx_spec]
    if output_attentions:
        out_shapes.append(jax.ShapeDtypeStruct((B, nH, S, S), dtype))
        out_specs.append(
            pl.BlockSpec((1, nH, tq, S), lambda b, t: (b, 0, t, 0)))

    kernel = functools.partial(
        _attn_kernel, num_heads=nH, head_dim=D, hidden=H, q_tile=tq,
        compute_dtype=compute_dtype, approx_recip=approx_reciprocal)

    itemsize = jnp.dtype(dtype).itemsize
    w_itemsize = jnp.dtype(w_qkv.dtype).itemsize
    bytes_accessed = (B * S * H * itemsize                 # hidden states in
                      + H * 3 * H * w_itemsize             # fused weight
                      + 3 * H * 4 + B * S * 4              # bias + mask
                      + B * S * H * itemsize)              # context out
    if output_attentions:
        bytes_accessed += B * nH * S * S * itemsize
    cost = pl.CostEstimate(
        flops=B * (2 * S * H * 3 * H + 4 * S * S * H),
        transcendentals=B * nH * S * S,
        bytes_accessed=bytes_accessed)

    outs = pl.pallas_call(
        kernel,
        out_shape=tuple(out_shapes),
        grid_spec=pltpu.PrefetchScalarGridSpec(
            num_scalar_prefetch=0,
            grid=(B, n_q_tiles),
            in_specs=[x_spec, w_spec, b_spec, m_spec],
            out_specs=tuple(out_specs),
            scratch_shapes=[pltpu.VMEM((S, 3 * H), scratch_dtype)],
        ),
        compiler_params=pltpu.CompilerParams(
            # t axis carries the qkv scratch across query tiles -> arbitrary.
            dimension_semantics=("parallel", "arbitrary"),
            vmem_limit_bytes=_vmem_limit_bytes(),
        ),
        cost_estimate=cost,
    )(hidden_states, w_qkv, b_qkv, mask)

    if output_attentions:
        return outs[0], outs[1]
    return (outs[0],)


def _reference(hidden_states, wq, bq, wk, bk, wv, bv, attention_mask, num_heads):
    """Pure-JAX reference mirroring the PyTorch forward."""
    B, S, H = hidden_states.shape
    nH = num_heads
    D = H // nH

    def proj(x, w, b):
        return jnp.einsum('bsh,oh->bso', x, w) + b

    def split_heads(x):
        return jnp.transpose(x.reshape(B, S, nH, D), (0, 2, 1, 3))

    q = split_heads(proj(hidden_states, wq, bq))
    k = split_heads(proj(hidden_states, wk, bk))
    v = split_heads(proj(hidden_states, wv, bv))

    scores = jnp.einsum('bhqd,bhkd->bhqk', q, k) / math.sqrt(D)
    if attention_mask is not None:
        scores = scores + attention_mask
    probs = jax.nn.softmax(scores, axis=-1)
    ctx = jnp.einsum('bhqk,bhkd->bhqd', probs, v)
    ctx = jnp.transpose(ctx, (0, 2, 1, 3)).reshape(B, S, H)
    return ctx, probs


if __name__ == "__main__":
    # Config: hidden=32, heads=4, head_dim=8, batch=2, seq=8
    B, S, H, nH = 2, 8, 32, 4

    key = jax.random.PRNGKey(0)
    keys = jax.random.split(key, 8)

    hidden_states = jax.random.normal(keys[0], (B, S, H), dtype=jnp.float32)

    # Deterministic nn.Linear-style parameter init (uniform in +/- 1/sqrt(H)).
    bound = 1.0 / math.sqrt(H)
    wq = jax.random.uniform(keys[1], (H, H), minval=-bound, maxval=bound, dtype=jnp.float32)
    wk = jax.random.uniform(keys[2], (H, H), minval=-bound, maxval=bound, dtype=jnp.float32)
    wv = jax.random.uniform(keys[3], (H, H), minval=-bound, maxval=bound, dtype=jnp.float32)
    bq = jax.random.uniform(keys[4], (H,), minval=-bound, maxval=bound, dtype=jnp.float32)
    bk = jax.random.uniform(keys[5], (H,), minval=-bound, maxval=bound, dtype=jnp.float32)
    bv = jax.random.uniform(keys[6], (H,), minval=-bound, maxval=bound, dtype=jnp.float32)

    # Additive attention mask [B, 1, 1, S]: last two key positions of batch 1 masked.
    mask = jnp.zeros((B, 1, 1, S), dtype=jnp.float32)
    mask = mask.at[1, 0, 0, -2:].set(-1e9)

    ctx_ref, probs_ref = _reference(hidden_states, wq, bq, wk, bk, wv, bv,
                                    mask, num_heads=nH)

    # Path 1: default fast path (bf16 MXU operands + approx reciprocal),
    # output_attentions=True -> loose tolerance (intentional precision trade).
    ctx, probs = bert_self_attention(hidden_states, wq, bq, wk, bk, wv, bv,
                                     mask, num_heads=nH,
                                     output_attentions=True)
    jax.block_until_ready((ctx, probs))
    assert ctx.shape == (B, S, H)
    assert probs.shape == (B, nH, S, S)
    assert jnp.allclose(ctx, ctx_ref, rtol=3e-2, atol=3e-2)
    assert jnp.allclose(probs, probs_ref, rtol=3e-2, atol=3e-2)

    # Path 2: exact f32 path (bit-faithful math) with attentions -> tight tolerance.
    ctx_f32, probs_f32 = bert_self_attention(
        hidden_states, wq, bq, wk, bk, wv, bv, mask, num_heads=nH,
        output_attentions=True, compute_dtype=None, approx_reciprocal=False)
    jax.block_until_ready((ctx_f32, probs_f32))
    assert jnp.allclose(ctx_f32, ctx_ref, rtol=1e-5, atol=1e-5)
    assert jnp.allclose(probs_f32, probs_ref, rtol=1e-5, atol=1e-5)

    # Path 3: default forward (output_attentions=False) exact path -> no probs writeback.
    (ctx_only,) = bert_self_attention(hidden_states, wq, bq, wk, bk, wv, bv,
                                      mask, num_heads=nH,
                                      compute_dtype=None,
                                      approx_reciprocal=False)
    jax.block_until_ready(ctx_only)
    assert jnp.allclose(ctx_only, ctx_ref, rtol=1e-5, atol=1e-5)

    print("KERNEL_OK")
</pallas_src>

<mosaic_0001>
module attributes {stable_mosaic.version = 11 : i64} {
  func.func @_attn_kernel(%arg0: i32, %arg1: i32, %arg2: memref<1x8x32xf32, #tpu.memory_space<vmem>>, %arg3: memref<32x96xbf16, #tpu.memory_space<vmem>>, %arg4: memref<1x96xf32, #tpu.memory_space<vmem>>, %arg5: memref<1x1x8xf32, #tpu.memory_space<vmem>>, %arg6: memref<1x8x32xf32, #tpu.memory_space<vmem>>, %arg7: memref<1x4x8x8xf32, #tpu.memory_space<vmem>>, %arg8: memref<8x96xbf16, #tpu.memory_space<vmem>>) attributes {dimension_semantics = [#tpu.dimension_semantics<parallel>, #tpu.dimension_semantics<arbitrary>], iteration_bounds = array<i64: 2, 1>, scalar_prefetch = 0 : i64, scratch_operands = 1 : i64, tpu.core_type = #tpu.core_type<tc>, window_params = [{transform_indices = @transform_0, window_bounds = array<i64: 1, 8, 32>}, {pipeline_mode = #tpu.pipeline_mode<synchronous>, transform_indices = @transform_1, window_bounds = array<i64: 32, 96>}, {pipeline_mode = #tpu.pipeline_mode<synchronous>, transform_indices = @transform_2, window_bounds = array<i64: 1, 96>}, {transform_indices = @transform_3, window_bounds = array<i64: 1, 1, 8>}, {transform_indices = @transform_4, window_bounds = array<i64: 1, 8, 32>}, {transform_indices = @transform_5, window_bounds = array<i64: 1, 4, 8, 8>}]} {
    %c0_i32 = arith.constant 0 : i32
    %0 = arith.cmpi eq, %arg1, %c0_i32 : i32
    %1 = arith.extui %0 : i1 to i32
    %c0_i32_0 = arith.constant 0 : i32
    %2 = arith.cmpi ne, %1, %c0_i32_0 : i32
    scf.if %2 {
      %c0_52 = arith.constant 0 : index
      %c0_53 = arith.constant 0 : index
      %c0_54 = arith.constant 0 : index
      %107 = vector.load %arg2[%c0_52, %c0_53, %c0_54] : memref<1x8x32xf32, #tpu.memory_space<vmem>>, vector<1x8x32xf32>
      %108 = vector.shape_cast %107 : vector<1x8x32xf32> to vector<8x32xf32>
      %109 = arith.truncf %108 : vector<8x32xf32> to vector<8x32xbf16>
      %c0_55 = arith.constant 0 : index
      %c0_56 = arith.constant 0 : index
      %110 = vector.load %arg3[%c0_55, %c0_56] : memref<32x96xbf16, #tpu.memory_space<vmem>>, vector<32x96xbf16>
      %cst_57 = arith.constant dense<0.000000e+00> : vector<8x96xf32>
      %111 = tpu.matmul %109, %110, %cst_57 {dimension_numbers = #tpu.dot_dimension_numbers<[1], [0], [0], [1], [0, 0, 1, 1], [], []>} : vector<8x32xbf16>, vector<32x96xbf16>, vector<8x96xf32> -> vector<8x96xf32>
      %c0_58 = arith.constant 0 : index
      %c0_59 = arith.constant 0 : index
      %112 = vector.load %arg4[%c0_58, %c0_59] : memref<1x96xf32, #tpu.memory_space<vmem>>, vector<1x96xf32>
      %113 = vector.broadcast %112 : vector<1x96xf32> to vector<8x96xf32>
      %114 = arith.addf %111, %113 : vector<8x96xf32>
      %115 = arith.truncf %114 : vector<8x96xf32> to vector<8x96xbf16>
      %c0_60 = arith.constant 0 : index
      %c0_61 = arith.constant 0 : index
      %116 = vector.load %arg8[%c0_60, %c0_61] : memref<8x96xbf16, #tpu.memory_space<vmem>>, vector<8x96xbf16>
      tpu.vector_store %arg8[%c0_60, %c0_61], %115 {strides = array<i32>} : memref<8x96xbf16, #tpu.memory_space<vmem>>, vector<8x96xbf16>,
    } else {
    }
    %c0 = arith.constant 0 : index
    %c0_1 = arith.constant 0 : index
    %c0_2 = arith.constant 0 : index
    %3 = vector.load %arg5[%c0, %c0_1, %c0_2] : memref<1x1x8xf32, #tpu.memory_space<vmem>>, vector<1x1x8xf32>
    %4 = vector.shape_cast %3 : vector<1x1x8xf32> to vector<1x8xf32>
    %c8_i32 = arith.constant 8 : i32
    %5 = arith.muli %arg1, %c8_i32 : i32
    %6 = tpu.assume_multiple %5, 8 : i32
    %7 = arith.index_cast %6 : i32 to index
    %c0_3 = arith.constant 0 : index
    %8 = vector.load %arg8[%7, %c0_3] : memref<8x96xbf16, #tpu.memory_space<vmem>>, vector<8x8xbf16>
    %c0_4 = arith.constant 0 : index
    %c32 = arith.constant 32 : index
    %9 = vector.load %arg8[%c0_4, %c32] : memref<8x96xbf16, #tpu.memory_space<vmem>>, vector<8x8xbf16>
    %c0_5 = arith.constant 0 : index
    %c64 = arith.constant 64 : index
    %10 = vector.load %arg8[%c0_5, %c64] : memref<8x96xbf16, #tpu.memory_space<vmem>>, vector<8x8xbf16>
    %cst = arith.constant dense<0.000000e+00> : vector<8x8xf32>
    %11 = tpu.matmul %8, %9, %cst {dimension_numbers = #tpu.dot_dimension_numbers<[1], [1], [0], [0], [0, 0, 1, 0], [], []>} : vector<8x8xbf16>, vector<8x8xbf16>, vector<8x8xf32> -> vector<8x8xf32>
    %12 = vector.broadcast %4 : vector<1x8xf32> to vector<8x8xf32>
    %13 = arith.addf %11, %12 : vector<8x8xf32>
    %cst_6 = arith.constant dense<0xFF800000> : vector<8xf32>
    %14 = vector.multi_reduction <maximumf>, %13, %cst_6 [1] : vector<8x8xf32> to vector<8xf32>
    %15 = vector.shape_cast %14 : vector<8xf32> to vector<8x1xf32>
    %16 = vector.broadcast %15 : vector<8x1xf32> to vector<8x8xf32>
    %17 = arith.subf %13, %16 : vector<8x8xf32>
    %18 = math.exp %17 : vector<8x8xf32>
    %cst_7 = arith.constant dense<0.000000e+00> : vector<8xf32>
    %19 = vector.multi_reduction <add>, %18, %cst_7 [1] : vector<8x8xf32> to vector<8xf32>
    %20 = vector.shape_cast %19 : vector<8xf32> to vector<8x1xf32>
    %21 = tpu.reciprocal %20 {approx = true} : vector<8x1xf32> -> vector<8x1xf32>
    %22 = vector.broadcast %21 : vector<8x1xf32> to vector<8x8xf32>
    %23 = arith.mulf %18, %22 : vector<8x8xf32>
    %c0_8 = arith.constant 0 : index
    %c0_9 = arith.constant 0 : index
    %c0_10 = arith.constant 0 : index
    %c0_11 = arith.constant 0 : index
    %24 = vector.load %arg7[%c0_8, %c0_9, %c0_10, %c0_11] : memref<1x4x8x8xf32, #tpu.memory_space<vmem>>, vector<1x1x8x8xf32>
    %25 = vector.shape_cast %24 : vector<1x1x8x8xf32> to vector<8x8xf32>
    %26 = vector.shape_cast %23 : vector<8x8xf32> to vector<1x1x8x8xf32>
    tpu.vector_store %arg7[%c0_8, %c0_9, %c0_10, %c0_11], %26 {strides = array<i32>} : memref<1x4x8x8xf32, #tpu.memory_space<vmem>>, vector<1x1x8x8xf32>,
    %27 = arith.truncf %23 : vector<8x8xf32> to vector<8x8xbf16>
    %cst_12 = arith.constant dense<0.000000e+00> : vector<8x8xf32>
    %28 = tpu.matmul %27, %10, %cst_12 {dimension_numbers = #tpu.dot_dimension_numbers<[1], [0], [0], [1], [0, 0, 1, 1], [], []>} : vector<8x8xbf16>, vector<8x8xbf16>, vector<8x8xf32> -> vector<8x8xf32>
    %c0_13 = arith.constant 0 : index
    %c0_14 = arith.constant 0 : index
    %c0_15 = arith.constant 0 : index
    %29 = vector.load %arg6[%c0_13, %c0_14, %c0_15] : memref<1x8x32xf32, #tpu.memory_space<vmem>>, vector<1x8x8xf32>
    %30 = vector.shape_cast %29 : vector<1x8x8xf32> to vector<8x8xf32>
    %31 = vector.shape_cast %28 : vector<8x8xf32> to vector<1x8x8xf32>
    tpu.vector_store %arg6[%c0_13, %c0_14, %c0_15], %31 {strides = array<i32>} : memref<1x8x32xf32, #tpu.memory_space<vmem>>, vector<1x8x8xf32>,
    %32 = arith.index_cast %6 : i32 to index
    %c8 = arith.constant 8 : index
    %33 = vector.load %arg8[%32, %c8] : memref<8x96xbf16, #tpu.memory_space<vmem>>, vector<8x8xbf16>
    %c0_16 = arith.constant 0 : index
    %c40 = arith.constant 40 : index
    %34 = vector.load %arg8[%c0_16, %c40] : memref<8x96xbf16, #tpu.memory_space<vmem>>, vector<8x8xbf16>
    %c0_17 = arith.constant 0 : index
    %c72 = arith.constant 72 : index
    %35 = vector.load %arg8[%c0_17, %c72] : memref<8x96xbf16, #tpu.memory_space<vmem>>, vector<8x8xbf16>
    %cst_18 = arith.constant dense<0.000000e+00> : vector<8x8xf32>
    %36 = tpu.matmul %33, %34, %cst_18 {dimension_numbers = #tpu.dot_dimension_numbers<[1], [1], [0], [0], [0, 0, 1, 0], [], []>} : vector<8x8xbf16>, vector<8x8xbf16>, vector<8x8xf32> -> vector<8x8xf32>
    %37 = vector.broadcast %4 : vector<1x8xf32> to vector<8x8xf32>
    %38 = arith.addf %36, %37 : vector<8x8xf32>
    %cst_19 = arith.constant dense<0xFF800000> : vector<8xf32>
    %39 = vector.multi_reduction <maximumf>, %38, %cst_19 [1] : vector<8x8xf32> to vector<8xf32>
    %40 = vector.shape_cast %39 : vector<8xf32> to vector<8x1xf32>
    %41 = vector.broadcast %40 : vector<8x1xf32> to vector<8x8xf32>
    %42 = arith.subf %38, %41 : vector<8x8xf32>
    %43 = math.exp %42 : vector<8x8xf32>
    %cst_20 = arith.constant dense<0.000000e+00> : vector<8xf32>
    %44 = vector.multi_reduction <add>, %43, %cst_20 [1] : vector<8x8xf32> to vector<8xf32>
    %45 = vector.shape_cast %44 : vector<8xf32> to vector<8x1xf32>
    %46 = tpu.reciprocal %45 {approx = true} : vector<8x1xf32> -> vector<8x1xf32>
    %47 = vector.broadcast %46 : vector<8x1xf32> to vector<8x8xf32>
    %48 = arith.mulf %43, %47 : vector<8x8xf32>
    %c0_21 = arith.constant 0 : index
    %c1 = arith.constant 1 : index
    %c0_22 = arith.constant 0 : index
    %c0_23 = arith.constant 0 : index
    %49 = vector.load %arg7[%c0_21, %c1, %c0_22, %c0_23] : memref<1x4x8x8xf32, #tpu.memory_space<vmem>>, vector<1x1x8x8xf32>
    %50 = vector.shape_cast %49 : vector<1x1x8x8xf32> to vector<8x8xf32>
    %51 = vector.shape_cast %48 : vector<8x8xf32> to vector<1x1x8x8xf32>
    tpu.vector_store %arg7[%c0_21, %c1, %c0_22, %c0_23], %51 {strides = array<i32>} : memref<1x4x8x8xf32, #tpu.memory_space<vmem>>, vector<1x1x8x8xf32>,
    %52 = arith.truncf %48 : vector<8x8xf32> to vector<8x8xbf16>
    %cst_24 = arith.constant dense<0.000000e+00> : vector<8x8xf32>
    %53 = tpu.matmul %52, %35, %cst_24 {dimension_numbers = #tpu.dot_dimension_numbers<[1], [0], [0], [1], [0, 0, 1, 1], [], []>} : vector<8x8xbf16>, vector<8x8xbf16>, vector<8x8xf32> -> vector<8x8xf32>
    %c0_25 = arith.constant 0 : index
    %c0_26 = arith.constant 0 : index
    %c8_27 = arith.constant 8 : index
    %54 = vector.load %arg6[%c0_25, %c0_26, %c8_27] : memref<1x8x32xf32, #tpu.memory_space<vmem>>, vector<1x8x8xf32>
    %55 = vector.shape_cast %54 : vector<1x8x8xf32> to vector<8x8xf32>
    %56 = vector.shape_cast %53 : vector<8x8xf32> to vector<1x8x8xf32>
    tpu.vector_store %arg6[%c0_25, %c0_26, %c8_27], %56 {strides = array<i32>} : memref<1x8x32xf32, #tpu.memory_space<vmem>>, vector<1x8x8xf32>,
    %57 = arith.index_cast %6 : i32 to index
    %c16 = arith.constant 16 : index
    %58 = vector.load %arg8[%57, %c16] : memref<8x96xbf16, #tpu.memory_space<vmem>>, vector<8x8xbf16>
    %c0_28 = arith.constant 0 : index
    %c48 = arith.constant 48 : index
    %59 = vector.load %arg8[%c0_28, %c48] : memref<8x96xbf16, #tpu.memory_space<vmem>>, vector<8x8xbf16>
    %c0_29 = arith.constant 0 : index
    %c80 = arith.constant 80 : index
    %60 = vector.load %arg8[%c0_29, %c80] : memref<8x96xbf16, #tpu.memory_space<vmem>>, vector<8x8xbf16>
    %cst_30 = arith.constant dense<0.000000e+00> : vector<8x8xf32>
    %61 = tpu.matmul %58, %59, %cst_30 {dimension_numbers = #tpu.dot_dimension_numbers<[1], [1], [0], [0], [0, 0, 1, 0], [], []>} : vector<8x8xbf16>, vector<8x8xbf16>, vector<8x8xf32> -> vector<8x8xf32>
    %62 = vector.broadcast %4 : vector<1x8xf32> to vector<8x8xf32>
    %63 = arith.addf %61, %62 : vector<8x8xf32>
    %cst_31 = arith.constant dense<0xFF800000> : vector<8xf32>
    %64 = vector.multi_reduction <maximumf>, %63, %cst_31 [1] : vector<8x8xf32> to vector<8xf32>
    %65 = vector.shape_cast %64 : vector<8xf32> to vector<8x1xf32>
    %66 = vector.broadcast %65 : vector<8x1xf32> to vector<8x8xf32>
    %67 = arith.subf %63, %66 : vector<8x8xf32>
    %68 = math.exp %67 : vector<8x8xf32>
    %cst_32 = arith.constant dense<0.000000e+00> : vector<8xf32>
    %69 = vector.multi_reduction <add>, %68, %cst_32 [1] : vector<8x8xf32> to vector<8xf32>
    %70 = vector.shape_cast %69 : vector<8xf32> to vector<8x1xf32>
    %71 = tpu.reciprocal %70 {approx = true} : vector<8x1xf32> -> vector<8x1xf32>
    %72 = vector.broadcast %71 : vector<8x1xf32> to vector<8x8xf32>
    %73 = arith.mulf %68, %72 : vector<8x8xf32>
    %c0_33 = arith.constant 0 : index
    %c2 = arith.constant 2 : index
    %c0_34 = arith.constant 0 : index
    %c0_35 = arith.constant 0 : index
    %74 = vector.load %arg7[%c0_33, %c2, %c0_34, %c0_35] : memref<1x4x8x8xf32, #tpu.memory_space<vmem>>, vector<1x1x8x8xf32>
    %75 = vector.shape_cast %74 : vector<1x1x8x8xf32> to vector<8x8xf32>
    %76 = vector.shape_cast %73 : vector<8x8xf32> to vector<1x1x8x8xf32>
    tpu.vector_store %arg7[%c0_33, %c2, %c0_34, %c0_35], %76 {strides = array<i32>} : memref<1x4x8x8xf32, #tpu.memory_space<vmem>>, vector<1x1x8x8xf32>,
    %77 = arith.truncf %73 : vector<8x8xf32> to vector<8x8xbf16>
    %cst_36 = arith.constant dense<0.000000e+00> : vector<8x8xf32>
    %78 = tpu.matmul %77, %60, %cst_36 {dimension_numbers = #tpu.dot_dimension_numbers<[1], [0], [0], [1], [0, 0, 1, 1], [], []>} : vector<8x8xbf16>, vector<8x8xbf16>, vector<8x8xf32> -> vector<8x8xf32>
    %c0_37 = arith.constant 0 : index
    %c0_38 = arith.constant 0 : index
    %c16_39 = arith.constant 16 : index
    %79 = vector.load %arg6[%c0_37, %c0_38, %c16_39] : memref<1x8x32xf32, #tpu.memory_space<vmem>>, vector<1x8x8xf32>
    %80 = vector.shape_cast %79 : vector<1x8x8xf32> to vector<8x8xf32>
    %81 = vector.shape_cast %78 : vector<8x8xf32> to vector<1x8x8xf32>
    tpu.vector_store %arg6[%c0_37, %c0_38, %c16_39], %81 {strides = array<i32>} : memref<1x8x32xf32, #tpu.memory_space<vmem>>, vector<1x8x8xf32>,
    %82 = arith.index_cast %6 : i32 to index
    %c24 = arith.constant 24 : index
    %83 = vector.load %arg8[%82, %c24] : memref<8x96xbf16, #tpu.memory_space<vmem>>, vector<8x8xbf16>
    %c0_40 = arith.constant 0 : index
    %c56 = arith.constant 56 : index
    %84 = vector.load %arg8[%c0_40, %c56] : memref<8x96xbf16, #tpu.memory_space<vmem>>, vector<8x8xbf16>
    %c0_41 = arith.constant 0 : index
    %c88 = arith.constant 88 : index
    %85 = vector.load %arg8[%c0_41, %c88] : memref<8x96xbf16, #tpu.memory_space<vmem>>, vector<8x8xbf16>
    %cst_42 = arith.constant dense<0.000000e+00> : vector<8x8xf32>
    %86 = tpu.matmul %83, %84, %cst_42 {dimension_numbers = #tpu.dot_dimension_numbers<[1], [1], [0], [0], [0, 0, 1, 0], [], []>} : vector<8x8xbf16>, vector<8x8xbf16>, vector<8x8xf32> -> vector<8x8xf32>
    %87 = vector.broadcast %4 : vector<1x8xf32> to vector<8x8xf32>
    %88 = arith.addf %86, %87 : vector<8x8xf32>
    %cst_43 = arith.constant dense<0xFF800000> : vector<8xf32>
    %89 = vector.multi_reduction <maximumf>, %88, %cst_43 [1] : vector<8x8xf32> to vector<8xf32>
    %90 = vector.shape_cast %89 : vector<8xf32> to vector<8x1xf32>
    %91 = vector.broadcast %90 : vector<8x1xf32> to vector<8x8xf32>
    %92 = arith.subf %88, %91 : vector<8x8xf32>
    %93 = math.exp %92 : vector<8x8xf32>
    %cst_44 = arith.constant dense<0.000000e+00> : vector<8xf32>
    %94 = vector.multi_reduction <add>, %93, %cst_44 [1] : vector<8x8xf32> to vector<8xf32>
    %95 = vector.shape_cast %94 : vector<8xf32> to vector<8x1xf32>
    %96 = tpu.reciprocal %95 {approx = true} : vector<8x1xf32> -> vector<8x1xf32>
    %97 = vector.broadcast %96 : vector<8x1xf32> to vector<8x8xf32>
    %98 = arith.mulf %93, %97 : vector<8x8xf32>
    %c0_45 = arith.constant 0 : index
    %c3 = arith.constant 3 : index
    %c0_46 = arith.constant 0 : index
    %c0_47 = arith.constant 0 : index
    %99 = vector.load %arg7[%c0_45, %c3, %c0_46, %c0_47] : memref<1x4x8x8xf32, #tpu.memory_space<vmem>>, vector<1x1x8x8xf32>
    %100 = vector.shape_cast %99 : vector<1x1x8x8xf32> to vector<8x8xf32>
    %101 = vector.shape_cast %98 : vector<8x8xf32> to vector<1x1x8x8xf32>
    tpu.vector_store %arg7[%c0_45, %c3, %c0_46, %c0_47], %101 {strides = array<i32>} : memref<1x4x8x8xf32, #tpu.memory_space<vmem>>, vector<1x1x8x8xf32>,
    %102 = arith.truncf %98 : vector<8x8xf32> to vector<8x8xbf16>
    %cst_48 = arith.constant dense<0.000000e+00> : vector<8x8xf32>
    %103 = tpu.matmul %102, %85, %cst_48 {dimension_numbers = #tpu.dot_dimension_numbers<[1], [0], [0], [1], [0, 0, 1, 1], [], []>} : vector<8x8xbf16>, vector<8x8xbf16>, vector<8x8xf32> -> vector<8x8xf32>
    %c0_49 = arith.constant 0 : index
    %c0_50 = arith.constant 0 : index
    %c24_51 = arith.constant 24 : index
    %104 = vector.load %arg6[%c0_49, %c0_50, %c24_51] : memref<1x8x32xf32, #tpu.memory_space<vmem>>, vector<1x8x8xf32>
    %105 = vector.shape_cast %104 : vector<1x8x8xf32> to vector<8x8xf32>
    %106 = vector.shape_cast %103 : vector<8x8xf32> to vector<1x8x8xf32>
    tpu.vector_store %arg6[%c0_49, %c0_50, %c24_51], %106 {strides = array<i32>} : memref<1x8x32xf32, #tpu.memory_space<vmem>>, vector<1x8x8xf32>,
    return
  }
  func.func @transform_0(%arg0: i32, %arg1: i32) -> (i32, i32, i32) {
    %c0_i32 = arith.constant 0 : i32
    %c0_i32_0 = arith.constant 0 : i32
    %c0_i32_1 = arith.constant 0 : i32
    return %arg0, %c0_i32, %c0_i32_0 : i32, i32, i32
  }
  func.func @transform_1(%arg0: i32, %arg1: i32) -> (i32, i32) {
    %c0_i32 = arith.constant 0 : i32
    %c0_i32_0 = arith.constant 0 : i32
    %c0_i32_1 = arith.constant 0 : i32
    return %c0_i32, %c0_i32_0 : i32, i32
  }
  func.func @transform_2(%arg0: i32, %arg1: i32) -> (i32, i32) {
    %c0_i32 = arith.constant 0 : i32
    %c0_i32_0 = arith.constant 0 : i32
    %c0_i32_1 = arith.constant 0 : i32
    return %c0_i32, %c0_i32_0 : i32, i32
  }
  func.func @transform_3(%arg0: i32, %arg1: i32) -> (i32, i32, i32) {
    %c0_i32 = arith.constant 0 : i32
    %c0_i32_0 = arith.constant 0 : i32
    %c0_i32_1 = arith.constant 0 : i32
    return %arg0, %c0_i32, %c0_i32_0 : i32, i32, i32
  }
  func.func @transform_4(%arg0: i32, %arg1: i32) -> (i32, i32, i32) {
    %c0_i32 = arith.constant 0 : i32
    %c0_i32_0 = arith.constant 0 : i32
    return %arg0, %arg1, %c0_i32 : i32, i32, i32
  }
  func.func @transform_5(%arg0: i32, %arg1: i32) -> (i32, i32, i32, i32) {
    %c0_i32 = arith.constant 0 : i32
    %c0_i32_0 = arith.constant 0 : i32
    %c0_i32_1 = arith.constant 0 : i32
    return %arg0, %c0_i32, %arg1, %c0_i32_0 : i32, i32, i32, i32
  }
}

</mosaic_0001>

<llo_original>
// kernel: tpu_custom_call.1
$region0: #{tpu_custom_call.1}
  #allocation0 [shape = 'u32[]', space=smem, size = 0x4, offset = 0x4, fixed_abs, tag = 'smem constant byte address 0x4 - core index']
  #allocation1 [shape = 'u32[144,128]{1,0:T(1,128)}', space=vmem, size = 0x12000, scoped, tag = 'internal scratch']
  #allocation2 [shape = 'bf16[8,96]{1,0:T(8,128)(2,1)}', space=vmem, size = 0x800, scoped, tag = 'scratch operand']
  %s0 = inlined_call_operand.hbm [shape: f32[2,8,32], index: 0, kind: input, shape index: {}]
  %s1 = inlined_call_operand.hbm [shape: bf16[32,96], index: 1, kind: input, shape index: {}]
  %s2 = inlined_call_operand.vmem [shape: f32[1,96], index: 2, kind: input, shape index: {}]
  %s3 = inlined_call_operand.vmem [shape: f32[2,1,8], index: 3, kind: input, shape index: {}]
  %s4 = inlined_call_operand.hbm [shape: f32[2,8,32], index: 4, kind: output, shape index: {0}]
  %s5 = inlined_call_operand.hbm [shape: f32[2,4,8,8], index: 5, kind: output, shape index: {1}]
  %6 = xla_tuple %s4, %s5
  %s7 = sld [smem:[#allocation0]]
  $region69: #{tpu_custom_call.1} parent=0
    _
  %s9 = ssub.s32 1, %s7
  %s10 = scalar_select 0, %s9, %s7
  $region1: #{tpu_custom_call.1} parent=0
    #allocation3 [shape = 'u8[8192]{0}', space=vmem, size = 0x2000, scoped, tag = 'input window, operand 0']
    #allocation4 [shape = 's32[2]{0}', space=sflag, size = 0x8, scoped, tag = 'scoped memory for tpu_custom_call.1']
    #allocation5 [shape = 's32[2]{0}', space=sflag, size = 0x8, scoped, tag = 'scoped memory for tpu_custom_call.1']
    #allocation6 [shape = 'u8[8192]{0}', space=vmem, size = 0x2000, scoped, tag = 'input window, operand 1, single buffered']
    #allocation7 [shape = 's32[1]{0}', space=sflag, size = 0x4, scoped, tag = 'scoped memory for tpu_custom_call.1']
    #allocation8 [shape = 'u8[8192]{0}', space=vmem, size = 0x2000, scoped, tag = 'output window, operand 0']
    #allocation9 [shape = 'u8[32768]{0}', space=vmem, size = 0x8000, scoped, tag = 'output window, operand 1']
    #allocation10 [shape = 's32[2]{0}', space=sflag, size = 0x8, scoped, tag = 'scoped memory for tpu_custom_call.1']
    %11 = vsyncpa [#allocation4], 0
    %s12 = scalar_lea.sflag [#allocation4], 1
    %13 = vsyncpa %s12, 0
    %14 = vsyncpa [#allocation7], 0
    %15 = vsyncpa [#allocation5], 0
    %s16 = scalar_lea.sflag [#allocation5], 1
    %17 = vsyncpa %s16, 0
    %18 = vsyncpa [#allocation10], 0
    %s19 = scalar_lea.sflag [#allocation10], 1
    %20 = vsyncpa %s19, 0
    loop: start=0, step=1, limit=4
    $region2: #{tpu_custom_call.1} parent=1 // loop_pre_header
      _
    $region3: #{tpu_custom_call.1} parent=1 // loop_header
      %s22 = sphi 0, %s26
      %p23 = scmp.ge.s32.totalorder %s22, 4
      %s29 = sphi 0, %s41
      %s30 = sphi 0, %s37
      %s31 = sphi 0, %s29
      %s32 = sphi 0, %s30
      %s33 = sphi 0, %s31
      %s34 = sphi 0, %s32
      %s44 = sphi 0, %s46
      %s47 = sphi 0, %s44
      %s48 = sphi 0, %s47
      %s64 = sphi 0, %s48
      %s68 = sphi 0, %s68
      %s70 = sphi 0, %s68
      %s71 = sphi 0, %s70
      %s85 = sphi 0, %s71
      %s89 = sphi 0, %s89
      %s91 = sphi 0, %s89
      %s92 = sphi 0, %s91
      %s106 = sphi 0, %s92
      %s112 = sphi 0, %s114
      %s115 = sphi 0, %s112
      %s116 = sphi 0, %s115
      %s132 = sphi 0, %s116
      %s140 = sphi 0, %s142
      %s143 = sphi 0, %s140
      %s144 = sphi 0, %s143
      %s160 = sphi 0, %s144
      %s168 = sphi 0, %s170
      %s171 = sphi 0, %s168
      %s172 = sphi 0, %s171
      %s188 = sphi 0, %s172
    $region4: #{tpu_custom_call.1} parent=1 // loop_header_branch
      %25 = sbr.rel (%p23) target = $region8
    $region5: #{tpu_custom_call.1} parent=1 // loop_body
      %s27 = ssub.s32 %s22, 1
      %s28 = ssub.s32 %s22, 2
      %s35 = sadd.s32 1, %s30
      %p36 = scmp.ge.s32.totalorder %s35, 1
      %s37 = scalar_select %p36, 0, %s35
      %s38 = sadd.s32 1, %s29
      %s39 = scalar_select %p36, %s38, %s29
      %p40 = scmp.ge.s32.totalorder %s39, 2
      %s41 = scalar_select %p40, 0, %s39
      %s42 = ssub.s32 %s29, %s41
      %p43 = scmp.eq.s32.totalorder %s42, 0
      %s45 = sadd.s32 %s44, 1
      %s46 = scalar_select %p43, %s44, %s45
      %p49 = pneg %p43
      %p50 = scmp.eq.s32.totalorder %s22, 1
      %p51 = por %p49, %p50
      %p52 = scmp.ne.s32.totalorder %s44, %s47
      %p53 = scmp.eq.s32.totalorder %s22, 0
      %p54 = por %p52, %p53
      %p55 = scmp.ne.s32.totalorder %s44, %s47
      %p56 = scmp.eq.s32.totalorder %s27, 1
      %p57 = por %p55, %p56
      %p58 = scmp.ne.s32.totalorder %s47, %s48
      %p59 = scmp.eq.s32.totalorder %s27, 0
      %p60 = por %p58, %p59
      %p61 = scmp.ne.s32.totalorder %s47, %s48
      %p62 = scmp.eq.s32.totalorder %s28, 1
      %p63 = por %p61, %p62
      %p65 = scmp.ne.s32.totalorder %s48, %s64
      %p66 = scmp.eq.s32.totalorder %s28, 0
      %p67 = por %p65, %p66
      %s69 = sadd.s32 %s68, 1
      %p72 = scmp.eq.s32.totalorder %s22, 1
      %p73 = scmp.ne.s32.totalorder %s68, %s70
      %p74 = scmp.eq.s32.totalorder %s22, 0
      %p75 = por %p73, %p74
      %p76 = scmp.ne.s32.totalorder %s68, %s70
      %p77 = scmp.eq.s32.totalorder %s27, 1
      %p78 = por %p76, %p77
      %p79 = scmp.ne.s32.totalorder %s70, %s71
      %p80 = scmp.eq.s32.totalorder %s27, 0
      %p81 = por %p79, %p80
      %p82 = scmp.ne.s32.totalorder %s70, %s71
      %p83 = scmp.eq.s32.totalorder %s28, 1
      %p84 = por %p82, %p83
      %p86 = scmp.ne.s32.totalorder %s71, %s85
      %p87 = scmp.eq.s32.totalorder %s28, 0
      %p88 = por %p86, %p87
      %s90 = sadd.s32 %s89, 1
      %p93 = scmp.eq.s32.totalorder %s22, 1
      %p94 = scmp.ne.s32.totalorder %s89, %s91
      %p95 = scmp.eq.s32.totalorder %s22, 0
      %p96 = por %p94, %p95
      %p97 = scmp.ne.s32.totalorder %s89, %s91
      %p98 = scmp.eq.s32.totalorder %s27, 1
      %p99 = por %p97, %p98
      %p100 = scmp.ne.s32.totalorder %s91, %s92
      %p101 = scmp.eq.s32.totalorder %s27, 0
      %p102 = por %p100, %p101
      %p103 = scmp.ne.s32.totalorder %s91, %s92
      %p104 = scmp.eq.s32.totalorder %s28, 1
      %p105 = por %p103, %p104
      %p107 = scmp.ne.s32.totalorder %s92, %s106
      %p108 = scmp.eq.s32.totalorder %s28, 0
      %p109 = por %p107, %p108
      %s110 = ssub.s32 %s29, %s41
      %p111 = scmp.eq.s32.totalorder %s110, 0
      %s113 = sadd.s32 %s112, 1
      %s114 = scalar_select %p111, %s112, %s113
      %p117 = pneg %p111
      %p118 = scmp.eq.s32.totalorder %s22, 1
      %p119 = por %p117, %p118
      %p120 = scmp.ne.s32.totalorder %s112, %s115
      %p121 = scmp.eq.s32.totalorder %s22, 0
      %p122 = por %p120, %p121
      %p123 = scmp.ne.s32.totalorder %s112, %s115
      %p124 = scmp.eq.s32.totalorder %s27, 1
      %p125 = por %p123, %p124
      %p126 = scmp.ne.s32.totalorder %s115, %s116
      %p127 = scmp.eq.s32.totalorder %s27, 0
      %p128 = por %p126, %p127
      %p129 = scmp.ne.s32.totalorder %s115, %s116
      %p130 = scmp.eq.s32.totalorder %s28, 1
      %p131 = por %p129, %p130
      %p133 = scmp.ne.s32.totalorder %s116, %s132
      %p134 = scmp.eq.s32.totalorder %s28, 0
      %p135 = por %p133, %p134
      %s136 = ssub.s32 %s29, %s41
      %s137 = ssub.s32 %s30, %s37
      %s138 = sor.u32 %s136, %s137
      %p139 = scmp.eq.s32.totalorder %s138, 0
      %s141 = sadd.s32 %s140, 1
      %s142 = scalar_select %p139, %s140, %s141
      %p145 = pneg %p139
      %p146 = scmp.eq.s32.totalorder %s22, 1
      %p147 = por %p145, %p146
      %p148 = scmp.ne.s32.totalorder %s140, %s143
      %p149 = scmp.eq.s32.totalorder %s22, 0
      %p150 = por %p148, %p149
      %p151 = scmp.ne.s32.totalorder %s140, %s143
      %p152 = scmp.eq.s32.totalorder %s27, 1
      %p153 = por %p151, %p152
      %p154 = scmp.ne.s32.totalorder %s143, %s144
      %p155 = scmp.eq.s32.totalorder %s27, 0
      %p156 = por %p154, %p155
      %p157 = scmp.ne.s32.totalorder %s143, %s144
      %p158 = scmp.eq.s32.totalorder %s28, 1
      %p159 = por %p157, %p158
      %p161 = scmp.ne.s32.totalorder %s144, %s160
      %p162 = scmp.eq.s32.totalorder %s28, 0
      %p163 = por %p161, %p162
      %s164 = ssub.s32 %s29, %s41
      %s165 = ssub.s32 %s30, %s37
      %s166 = sor.u32 %s164, %s165
      %p167 = scmp.eq.s32.totalorder %s166, 0
      %s169 = sadd.s32 %s168, 1
      %s170 = scalar_select %p167, %s168, %s169
      %p173 = pneg %p167
      %p174 = scmp.eq.s32.totalorder %s22, 1
      %p175 = por %p173, %p174
      %p176 = scmp.ne.s32.totalorder %s168, %s171
      %p177 = scmp.eq.s32.totalorder %s22, 0
      %p178 = por %p176, %p177
      %p179 = scmp.ne.s32.totalorder %s168, %s171
      %p180 = scmp.eq.s32.totalorder %s27, 1
      %p181 = por %p179, %p180
      %p182 = scmp.ne.s32.totalorder %s171, %s172
      %p183 = scmp.eq.s32.totalorder %s27, 0
      %p184 = por %p182, %p183
      %p185 = scmp.ne.s32.totalorder %s171, %s172
      %p186 = scmp.eq.s32.totalorder %s28, 1
      %p187 = por %p185, %p186
      %p189 = scmp.ne.s32.totalorder %s172, %s188
      %p190 = scmp.eq.s32.totalorder %s28, 0
      %p191 = por %p189, %p190
      %p192 = scmp.le.s32.totalorder 1, %s22
      %p193 = scmp.lt.s32.totalorder %s22, 3
      %p194 = pnand %p192, %p193
      %p195 = pneg %p194
      // Predicated region
      $region9: #{tpu_custom_call.1} parent=5 // pred_check
        _
      $region10: #{tpu_custom_call.1} parent=5 // pred_check_branch
        %197 = sbr.rel (%p194) target = $region12
      $region11: #{tpu_custom_call.1} parent=5 // pred_region
        %s198 = ssub.s32 %s22, 1
        // Predicated region
        $region13: #{tpu_custom_call.1} parent=11 // pred_check
          %p199 = pneg %p81
        $region14: #{tpu_custom_call.1} parent=11 // pred_check_branch
          %201 = sbr.rel (%p199) target = $region16
        $region15: #{tpu_custom_call.1} parent=11 // pred_region
          %s203 = ssub.s32 256, 256
          %204 = vsyncadd [#allocation7], %s203
          %s205 = sshll.u32 [#allocation6], 4
          %s206 = int_to_ptr.vmem [resolvable:$true] %s205
          %211 = dma.hbm_to_vmem [thread:$0]  %s1, 256, %s206, [#allocation7], 64, 64, 4
        $region16: #{tpu_custom_call.1} parent=11 // pred_fallthru
          _
        // Predicated region
        $region17: #{tpu_custom_call.1} parent=11 // pred_check
          %p212 = pneg %p102
        $region18: #{tpu_custom_call.1} parent=11 // pred_check_branch
          %214 = sbr.rel (%p212) target = $region20
        $region19: #{tpu_custom_call.1} parent=11 // pred_region
          _
        $region20: #{tpu_custom_call.1} parent=11 // pred_fallthru
          _
      $region12: #{tpu_custom_call.1} parent=5 // pred_fallthru
        _
      %p215 = scmp.lt.s32.totalorder %s22, 2
      // Predicated region
      $region21: #{tpu_custom_call.1} parent=5 // pred_check
        %p216 = pneg %p215
      $region22: #{tpu_custom_call.1} parent=5 // pred_check_branch
        %218 = sbr.rel (%p216) target = $region24
      $region23: #{tpu_custom_call.1} parent=5 // pred_region
        // Predicated region
        $region25: #{tpu_custom_call.1} parent=23 // pred_check
          %p219 = pneg %p54
        $region26: #{tpu_custom_call.1} parent=23 // pred_check_branch
          %221 = sbr.rel (%p219) target = $region28
        $region27: #{tpu_custom_call.1} parent=23 // pred_region
          %s222 = sand.u32 %s44, 1
          %s223 = scalar_lea.sflag [#allocation4], %s222
          %s224 = sand.u32 %s44, 1
          %s225 = smul.addr %s224, 8
          %s226 = scalar_lea.vmem [#allocation3], %s225
          %s228 = ssub.s32 128, 128
          %229 = vsyncadd %s223, %s228
          %s230 = smul.addr %s29, 128
          %s231 = scalar_lea.hbm %s0, %s230
          %s233 = sshll.u32 %s226, 4
          %s234 = int_to_ptr.vmem [resolvable:$true] %s233
          %236 = dma.hbm_to_vmem [thread:$0]  %s231, 128, %s234, %s223
        $region28: #{tpu_custom_call.1} parent=23 // pred_fallthru
          _
        // Predicated region
        $region29: #{tpu_custom_call.1} parent=23 // pred_check
          %p237 = pneg %p122
        $region30: #{tpu_custom_call.1} parent=23 // pred_check_branch
          %239 = sbr.rel (%p237) target = $region32
        $region31: #{tpu_custom_call.1} parent=23 // pred_region
          %p240 = scmp.lt.s32.totalorder %s29, 1
          %s241 = scalar_select %p240, %s29, 1
          %s242 = scalar_lea.vmem %s3, %s241
        $region32: #{tpu_custom_call.1} parent=23 // pred_fallthru
          _
      $region24: #{tpu_custom_call.1} parent=5 // pred_fallthru
        _
      %p243 = scmp.le.s32.totalorder 1, %s22
      %p244 = scmp.lt.s32.totalorder %s22, 3
      %p245 = pnand %p243, %p244
      %p246 = pneg %p245
      // Predicated region
      $region33: #{tpu_custom_call.1} parent=5 // pred_check
        _
      $region34: #{tpu_custom_call.1} parent=5 // pred_check_branch
        %248 = sbr.rel (%p245) target = $region36
      $region35: #{tpu_custom_call.1} parent=5 // pred_region
        %s249 = ssub.s32 %s22, 1
        %s250 = sand.u32 %s47, 1
        %s251 = scalar_lea.sflag [#allocation4], %s250
        %s252 = sand.u32 %s47, 1
        %s253 = smul.addr %s252, 8
        %s254 = scalar_lea.vmem [#allocation3], %s253
        // Predicated region
        $region37: #{tpu_custom_call.1} parent=35 // pred_check
          %p255 = pneg %p60
        $region38: #{tpu_custom_call.1} parent=35 // pred_check_branch
          %257 = sbr.rel (%p255) target = $region40
        $region39: #{tpu_custom_call.1} parent=35 // pred_region
          %258 = dma.done %s251, 128
        $region40: #{tpu_custom_call.1} parent=35 // pred_fallthru
          _
        // Predicated region
        $region41: #{tpu_custom_call.1} parent=35 // pred_check
          %p259 = pneg %p81
        $region42: #{tpu_custom_call.1} parent=35 // pred_check_branch
          %261 = sbr.rel (%p259) target = $region44
        $region43: #{tpu_custom_call.1} parent=35 // pred_region
          %262 = dma.done [#allocation7], 256
        $region44: #{tpu_custom_call.1} parent=35 // pred_fallthru
          _
        %s263 = sand.u32 %s47, 1
        %s264 = scalar_lea.sflag [#allocation4], %s263
        %s265 = sand.u32 %s47, 1
        %s266 = smul.addr %s265, 8
        %s267 = scalar_lea.vmem [#allocation3], %s266
        %p268 = pneg %p60
        %p269 = pneg %p57
        %p270 = pneg %p81
        %p271 = pneg %p78
        %p272 = pneg %p102
        %p273 = pneg %p99
        %p274 = scmp.lt.s32.totalorder %s31, 1
        %s275 = scalar_select %p274, %s31, 1
        %s276 = scalar_lea.vmem %s3, %s275
        %p277 = pneg %p128
        %p278 = pneg %p125
        %p279 = pneg %p156
        %p280 = pneg %p153
        %s281 = sand.u32 %s143, 1
        %s282 = scalar_lea.sflag [#allocation5], %s281
        %s283 = sand.u32 %s143, 1
        %s284 = smul.addr %s283, 8
        %s285 = scalar_lea.vmem [#allocation8], %s284
        %p286 = pneg %p184
        %p287 = pneg %p181
        %s288 = sand.u32 %s171, 1
        %s289 = scalar_lea.sflag [#allocation10], %s288
        %s290 = sand.u32 %s171, 1
        %s291 = smul.addr %s290, 32
        %s292 = scalar_lea.vmem [#allocation9], %s291
        %p293 = scmp.lt.s32.totalorder %s31, 1
        %s294 = scalar_select %p293, %s31, 1
        %s295 = scalar_lea.vmem %s3, %s294
        %p297 = scmp.eq.s32.totalorder %s32, 0
        // Predicated region
        $region45: #{tpu_custom_call.1} parent=35 // pred_check
          %p298 = pneg %p297
        $region46: #{tpu_custom_call.1} parent=35 // pred_check_branch
          %300 = sbr.rel (%p298) target = $region48
        $region47: #{tpu_custom_call.1} parent=35 // pred_region
          %v301 = vld [vmem:[%s254] sm:$0xff]
          %v302 = vpack.c.bf16 %v301, %v301
          %v303 = vld [vmem:[#allocation6] sm:$0xf]
          %v304 = vld [vmem:[#allocation6 + $0x4] sm:$0xf]
          %v305 = vld [vmem:[#allocation6 + $0x8] sm:$0xf]
          %v306 = vld [vmem:[#allocation6 + $0xc] sm:$0xf]
          %v307 = vld [vmem:[%s2] sm:$0x1]
          %v309 = vlaneseq
          %v310 = vshrl.u32 %v309, 7
          %v311 = vsub.s32 0, %v310
          %v312 = vrot.slane %v307, %v311
          %v318 = vunpack.c.l.b16 %v303
          %v319 = vunpack.c.l.b16 %v304
          %v320 = vunpack.c.l.b16 %v305
          %v321 = vunpack.c.l.b16 %v306
          %v322 = vpack.c.b16 %v319, %v318
          %v323 = vpack.c.b16 %v321, %v320
          %vm326 = vcmask 261120
          %v328 = vsel %vm326, %v302, 0
          %330 = vmatprep.subr.bf16.mxu0 0
          %331 = vmatpush1.bf16.msra.mxu0 %v322
          %332 = vmatprep.subr.bf16.mxu0 0
          %333 = vmatpush1.bf16.msra.mxu0 %v323
          %334 = vmatprep.subr.bf16.mxu0 0
          %335 = vmatpush1.bf16.msra.mxu0 0
          %336 = vmatprep.subr.bf16.mxu0 0
          %337 = vmatpush1.bf16.msra.mxu0 0
          %338 = vmatprep.subr.bf16.mxu0 0
          %339 = vmatpush1.bf16.msra.mxu0 0
          %340 = vmatprep.subr.bf16.mxu0 0
          %341 = vmatpush1.bf16.msra.mxu0 0
          %342 = vmatprep.subr.bf16.mxu0 0
          %343 = vmatpush1.bf16.msra.mxu0 0
          %344 = vmatprep.subr.bf16.mxu0 0
          %345 = vmatpush1.bf16.msra.mxu0 0
          %346 = vmatprep.subr.bf16.mxu0 0
          %347 = vmatpush1.bf16.msra.mxu0 0
          %348 = vmatprep.subr.bf16.mxu0 0
          %349 = vmatpush1.bf16.msra.mxu0 0
          %350 = vmatprep.subr.bf16.mxu0 0
          %351 = vmatpush1.bf16.msra.mxu0 0
          %352 = vmatprep.subr.bf16.mxu0 0
          %353 = vmatpush1.bf16.msra.mxu0 0
          %354 = vmatprep.subr.bf16.mxu0 0
          %355 = vmatpush1.bf16.msra.mxu0 0
          %356 = vmatprep.subr.bf16.mxu0 0
          %357 = vmatpush1.bf16.msra.mxu0 0
          %358 = vmatprep.subr.bf16.mxu0 0
          %359 = vmatpush1.bf16.msra.mxu0 0
          %360 = vmatprep.subr.bf16.mxu0 0
          %361 = vmatpush1.bf16.msra.mxu0 0
          %362 = vmatprep.mubr.bf16.mxu0 0
          %363 = vmatmul.mubr.bf16.gmra.mrb[0].mxu0 %v328
          %v364 = vpop.f32.mrb[0].mxu0
          %v365 = vadd.f32 %v312, %v364
          %v366 = vpop.f32.mrb[0].mxu0
          %v367 = vpop.f32.mrb[0].mxu0
          %v368 = vpop.f32.mrb[0].mxu0
          %369 = vdwg.mxu0
          %v370 = vpack.c.bf16 %v365, %v365
          %vm371 = vcmask 781312
          %372 = vst.msk [vmem:[#allocation2] sm:$0xf] %vm371, %v370
        $region48: #{tpu_custom_call.1} parent=35 // pred_fallthru
          _
        %v373 = vld [vmem:[%s295] sm:$0x1]
        %s374 = smul.u32 %s32, 8
        %s375 = sshra.s32 %s374, 3
        %s376 = sand.u32 %s374, 7
        %s377 = smul.addr %s375, 4
        %s378 = scalar_lea.vmem [#allocation2], %s377
        %v379 = vld [vmem:[%s378] sm:$0xf]
        %v380 = vld [vmem:[#allocation2] sm:$0xf]
        %v382 = vlaneseq
        %v383 = vshrl.u32 %v382, 7
        %v384 = vsub.s32 0, %v383
        %v385 = vrot.slane %v373, %v384
        %v388 = vunpack.c.l.b16 %v380
        %v389 = vpack.c.b16 %v388, %v388
        %390 = vrot.lane.b32.xlu0 %v389, 96
        %v391 = vpop.permute.xlu0 %390
        %vm392 = vcmask 64512
        %v394 = vsel %vm392, %v379, 0
        %v397 = vsel %vm392, %v391, 0
        %399 = vmatprep.subr.bf16.mxu0 0
        %400 = vmatpush1.bf16.xpose.msra.mxu0 %v397
        %401 = vmatprep.subr.bf16.mxu0 0
        %402 = vmatpush1.bf16.xpose.msra.mxu0 0
        %403 = vmatprep.subr.bf16.mxu0 0
        %404 = vmatpush1.bf16.xpose.msra.mxu0 0
        %405 = vmatprep.subr.bf16.mxu0 0
        %406 = vmatpush1.bf16.xpose.msra.mxu0 0
        %407 = vmatprep.subr.bf16.mxu0 0
        %408 = vmatpush1.bf16.xpose.msra.mxu0 0
        %409 = vmatprep.subr.bf16.mxu0 0
        %410 = vmatpush1.bf16.xpose.msra.mxu0 0
        %411 = vmatprep.subr.bf16.mxu0 0
        %412 = vmatpush1.bf16.xpose.msra.mxu0 0
        %413 = vmatprep.subr.bf16.mxu0 0
        %414 = vmatpush1.bf16.xpose.msra.mxu0 0
        %415 = vmatprep.subr.bf16.mxu0 0
        %416 = vmatpush1.bf16.xpose.msra.mxu0 0
        %417 = vmatprep.subr.bf16.mxu0 0
        %418 = vmatpush1.bf16.xpose.msra.mxu0 0
        %419 = vmatprep.subr.bf16.mxu0 0
        %420 = vmatpush1.bf16.xpose.msra.mxu0 0
        %421 = vmatprep.subr.bf16.mxu0 0
        %422 = vmatpush1.bf16.xpose.msra.mxu0 0
        %423 = vmatprep.subr.bf16.mxu0 0
        %424 = vmatpush1.bf16.xpose.msra.mxu0 0
        %425 = vmatprep.subr.bf16.mxu0 0
        %426 = vmatpush1.bf16.xpose.msra.mxu0 0
        %427 = vmatprep.subr.bf16.mxu0 0
        %428 = vmatpush1.bf16.xpose.msra.mxu0 0
        %429 = vmatprep.subr.bf16.mxu0 0
        %430 = vmatpush1.bf16.xpose.msra.mxu0 0
        %431 = vmatprep.mubr.bf16.mxu0 0
        %432 = vmatmul.mubr.bf16.gmra.mrb[0].mxu0 %v394
        %v433 = vpop.f32.mrb[0].mxu0
        %v434 = vadd.f32 %v385, %v433
        %v435 = vpop.f32.mrb[0].mxu0
        %v436 = vpop.f32.mrb[0].mxu0
        %v437 = vpop.f32.mrb[0].mxu0
        %438 = vdwg.mxu0
        %v439 = vsel %vm392, %v434, -inf
        %440 = vmax.xlane.f32.xlu0 %v439
        %v441 = vpop.xlane.xlu0 %440
        %v442 = vsub.f32 %v434, %v441
        %v443 = vmul.f32 %v442, 1.442695
        %v444 = vpow.pop %v443
        %v445 = vsel %vm392, %v444, 0.0
        %446 = vadd.xlane.f32.xlu0 %v445
        %v447 = vpop.xlane.xlu0 %446
        %v448 = vrcp.pop %v447
        %v449 = vmul.f32 %v444, %v448
        %450 = vst.msk [vmem:[%s292] sm:$0xff] %vm392, %v449
        %v451 = vpack.c.bf16 %v449, %v449
        %452 = vrot.lane.b32.xlu0 %v389, 64
        %v453 = vpop.permute.xlu0 %452
        %v455 = vsel %vm392, %v451, 0
        %vm457 = vcmask 1043456
        %v459 = vsel %vm457, %v453, 0
        %461 = vmatprep.subr.bf16.mxu0 0
        %462 = vmatpush1.bf16.msra.mxu0 %v459
        %463 = vmatprep.subr.bf16.mxu0 0
        %464 = vmatpush1.bf16.msra.mxu0 0
        %465 = vmatprep.subr.bf16.mxu0 0
        %466 = vmatpush1.bf16.msra.mxu0 0
        %467 = vmatprep.subr.bf16.mxu0 0
        %468 = vmatpush1.bf16.msra.mxu0 0
        %469 = vmatprep.subr.bf16.mxu0 0
        %470 = vmatpush1.bf16.msra.mxu0 0
        %471 = vmatprep.subr.bf16.mxu0 0
        %472 = vmatpush1.bf16.msra.mxu0 0
        %473 = vmatprep.subr.bf16.mxu0 0
        %474 = vmatpush1.bf16.msra.mxu0 0
        %475 = vmatprep.subr.bf16.mxu0 0
        %476 = vmatpush1.bf16.msra.mxu0 0
        %477 = vmatprep.subr.bf16.mxu0 0
        %478 = vmatpush1.bf16.msra.mxu0 0
        %479 = vmatprep.subr.bf16.mxu0 0
        %480 = vmatpush1.bf16.msra.mxu0 0
        %481 = vmatprep.subr.bf16.mxu0 0
        %482 = vmatpush1.bf16.msra.mxu0 0
        %483 = vmatprep.subr.bf16.mxu0 0
        %484 = vmatpush1.bf16.msra.mxu0 0
        %485 = vmatprep.subr.bf16.mxu0 0
        %486 = vmatpush1.bf16.msra.mxu0 0
        %487 = vmatprep.subr.bf16.mxu0 0
        %488 = vmatpush1.bf16.msra.mxu0 0
        %489 = vmatprep.subr.bf16.mxu0 0
        %490 = vmatpush1.bf16.msra.mxu0 0
        %491 = vmatprep.subr.bf16.mxu0 0
        %492 = vmatpush1.bf16.msra.mxu0 0
        %493 = vmatprep.mubr.bf16.mxu0 0
        %494 = vmatmul.mubr.bf16.gmra.mrb[0].mxu0 %v455
        %v495 = vpop.f32.mrb[0].mxu0
        %v496 = vadd.f32 0.0, %v495
        %v497 = vpop.f32.mrb[0].mxu0
        %v498 = vpop.f32.mrb[0].mxu0
        %v499 = vpop.f32.mrb[0].mxu0
        %500 = vdwg.mxu0
        %501 = vst.msk [vmem:[%s285] sm:$0xff] %vm392, %v496
        %v502 = vld [vmem:[%s378] sm:$0xf]
        %v503 = vld [vmem:[#allocation2] sm:$0xf]
        %v505 = vunpack.c.l.b16 %v502
        %v506 = vpack.c.b16 %v505, %v505
        %507 = vrot.lane.b32.xlu0 %v506, 120
        %v508 = vpop.permute.xlu0 %507
        %v510 = vunpack.c.l.b16 %v503
        %v511 = vpack.c.b16 %v510, %v510
        %512 = vrot.lane.b32.xlu0 %v511, 88
        %v513 = vpop.permute.xlu0 %512
        %v515 = vsel %vm392, %v508, 0
        %v518 = vsel %vm392, %v513, 0
        %520 = vmatprep.subr.bf16.mxu0 0
        %521 = vmatpush1.bf16.xpose.msra.mxu0 %v518
        %522 = vmatprep.subr.bf16.mxu0 0
        %523 = vmatpush1.bf16.xpose.msra.mxu0 0
        %524 = vmatprep.subr.bf16.mxu0 0
        %525 = vmatpush1.bf16.xpose.msra.mxu0 0
        %526 = vmatprep.subr.bf16.mxu0 0
        %527 = vmatpush1.bf16.xpose.msra.mxu0 0
        %528 = vmatprep.subr.bf16.mxu0 0
        %529 = vmatpush1.bf16.xpose.msra.mxu0 0
        %530 = vmatprep.subr.bf16.mxu0 0
        %531 = vmatpush1.bf16.xpose.msra.mxu0 0
        %532 = vmatprep.subr.bf16.mxu0 0
        %533 = vmatpush1.bf16.xpose.msra.mxu0 0
        %534 = vmatprep.subr.bf16.mxu0 0
        %535 = vmatpush1.bf16.xpose.msra.mxu0 0
        %536 = vmatprep.subr.bf16.mxu0 0
        %537 = vmatpush1.bf16.xpose.msra.mxu0 0
        %538 = vmatprep.subr.bf16.mxu0 0
        %539 = vmatpush1.bf16.xpose.msra.mxu0 0
        %540 = vmatprep.subr.bf16.mxu0 0
        %541 = vmatpush1.bf16.xpose.msra.mxu0 0
        %542 = vmatprep.subr.bf16.mxu0 0
        %543 = vmatpush1.bf16.xpose.msra.mxu0 0
        %544 = vmatprep.subr.bf16.mxu0 0
        %545 = vmatpush1.bf16.xpose.msra.mxu0 0
        %546 = vmatprep.subr.bf16.mxu0 0
        %547 = vmatpush1.bf16.xpose.msra.mxu0 0
        %548 = vmatprep.subr.bf16.mxu0 0
        %549 = vmatpush1.bf16.xpose.msra.mxu0 0
        %550 = vmatprep.subr.bf16.mxu0 0
        %551 = vmatpush1.bf16.xpose.msra.mxu0 0
        %552 = vmatprep.mubr.bf16.mxu0 0
        %553 = vmatmul.mubr.bf16.gmra.mrb[0].mxu0 %v515
        %v554 = vpop.f32.mrb[0].mxu0
        %v555 = vadd.f32 %v385, %v554
        %v556 = vpop.f32.mrb[0].mxu0
        %v557 = vpop.f32.mrb[0].mxu0
        %v558 = vpop.f32.mrb[0].mxu0
        %559 = vdwg.mxu0
        %v560 = vsel %vm392, %v555, -inf
        %561 = vmax.xlane.f32.xlu0 %v560
        %v562 = vpop.xlane.xlu0 %561
        %v563 = vsub.f32 %v555, %v562
        %v564 = vmul.f32 %v563, 1.442695
        %v565 = vpow.pop %v564
        %v566 = vsel %vm392, %v565, 0.0
        %567 = vadd.xlane.f32.xlu0 %v566
        %v568 = vpop.xlane.xlu0 %567
        %v569 = vrcp.pop %v568
        %v570 = vmul.f32 %v565, %v569
        %s571 = scalar_lea.vmem %s292, 8 [#allocation9]
        %572 = vst.msk [vmem:[%s571] sm:$0xff] %vm392, %v570
        %v573 = vpack.c.bf16 %v570, %v570
        %574 = vrot.lane.b32.xlu0 %v511, 56
        %v575 = vpop.permute.xlu0 %574
        %v577 = vsel %vm392, %v573, 0
        %v580 = vsel %vm457, %v575, 0
        %582 = vmatprep.subr.bf16.mxu0 0
        %583 = vmatpush1.bf16.msra.mxu0 %v580
        %584 = vmatprep.subr.bf16.mxu0 0
        %585 = vmatpush1.bf16.msra.mxu0 0
        %586 = vmatprep.subr.bf16.mxu0 0
        %587 = vmatpush1.bf16.msra.mxu0 0
        %588 = vmatprep.subr.bf16.mxu0 0
        %589 = vmatpush1.bf16.msra.mxu0 0
        %590 = vmatprep.subr.bf16.mxu0 0
        %591 = vmatpush1.bf16.msra.mxu0 0
        %592 = vmatprep.subr.bf16.mxu0 0
        %593 = vmatpush1.bf16.msra.mxu0 0
        %594 = vmatprep.subr.bf16.mxu0 0
        %595 = vmatpush1.bf16.msra.mxu0 0
        %596 = vmatprep.subr.bf16.mxu0 0
        %597 = vmatpush1.bf16.msra.mxu0 0
        %598 = vmatprep.subr.bf16.mxu0 0
        %599 = vmatpush1.bf16.msra.mxu0 0
        %600 = vmatprep.subr.bf16.mxu0 0
        %601 = vmatpush1.bf16.msra.mxu0 0
        %602 = vmatprep.subr.bf16.mxu0 0
        %603 = vmatpush1.bf16.msra.mxu0 0
        %604 = vmatprep.subr.bf16.mxu0 0
        %605 = vmatpush1.bf16.msra.mxu0 0
        %606 = vmatprep.subr.bf16.mxu0 0
        %607 = vmatpush1.bf16.msra.mxu0 0
        %608 = vmatprep.subr.bf16.mxu0 0
        %609 = vmatpush1.bf16.msra.mxu0 0
        %610 = vmatprep.subr.bf16.mxu0 0
        %611 = vmatpush1.bf16.msra.mxu0 0
        %612 = vmatprep.subr.bf16.mxu0 0
        %613 = vmatpush1.bf16.msra.mxu0 0
        %614 = vmatprep.mubr.bf16.mxu0 0
        %615 = vmatmul.mubr.bf16.gmra.mrb[0].mxu0 %v577
        %v616 = vpop.f32.mrb[0].mxu0
        %v617 = vadd.f32 0.0, %v616
        %v618 = vpop.f32.mrb[0].mxu0
        %v619 = vpop.f32.mrb[0].mxu0
        %v620 = vpop.f32.mrb[0].mxu0
        %621 = vdwg.mxu0
        %623 = vrot.lane.b32.xlu0 %v617, 8
        %v624 = vpop.permute.xlu0 %623
        %vm626 = vcmask 130112
        %627 = vst.msk [vmem:[%s285] sm:$0xff] %vm626, %v624
        %v628 = vld [vmem:[%s378] sm:$0xf]
        %v629 = vld [vmem:[#allocation2] sm:$0xf]
        %v631 = vunpack.c.l.b16 %v628
        %v632 = vpack.c.b16 %v631, %v631
        %633 = vrot.lane.b32.xlu0 %v632, 112
        %v634 = vpop.permute.xlu0 %633
        %v636 = vunpack.c.l.b16 %v629
        %v637 = vpack.c.b16 %v636, %v636
        %638 = vrot.lane.b32.xlu0 %v637, 80
        %v639 = vpop.permute.xlu0 %638
        %v641 = vsel %vm392, %v634, 0
        %v644 = vsel %vm392, %v639, 0
        %646 = vmatprep.subr.bf16.mxu0 0
        %647 = vmatpush1.bf16.xpose.msra.mxu0 %v644
        %648 = vmatprep.subr.bf16.mxu0 0
        %649 = vmatpush1.bf16.xpose.msra.mxu0 0
        %650 = vmatprep.subr.bf16.mxu0 0
        %651 = vmatpush1.bf16.xpose.msra.mxu0 0
        %652 = vmatprep.subr.bf16.mxu0 0
        %653 = vmatpush1.bf16.xpose.msra.mxu0 0
        %654 = vmatprep.subr.bf16.mxu0 0
        %655 = vmatpush1.bf16.xpose.msra.mxu0 0
        %656 = vmatprep.subr.bf16.mxu0 0
        %657 = vmatpush1.bf16.xpose.msra.mxu0 0
        %658 = vmatprep.subr.bf16.mxu0 0
        %659 = vmatpush1.bf16.xpose.msra.mxu0 0
        %660 = vmatprep.subr.bf16.mxu0 0
        %661 = vmatpush1.bf16.xpose.msra.mxu0 0
        %662 = vmatprep.subr.bf16.mxu0 0
        %663 = vmatpush1.bf16.xpose.msra.mxu0 0
        %664 = vmatprep.subr.bf16.mxu0 0
        %665 = vmatpush1.bf16.xpose.msra.mxu0 0
        %666 = vmatprep.subr.bf16.mxu0 0
        %667 = vmatpush1.bf16.xpose.msra.mxu0 0
        %668 = vmatprep.subr.bf16.mxu0 0
        %669 = vmatpush1.bf16.xpose.msra.mxu0 0
        %670 = vmatprep.subr.bf16.mxu0 0
        %671 = vmatpush1.bf16.xpose.msra.mxu0 0
        %672 = vmatprep.subr.bf16.mxu0 0
        %673 = vmatpush1.bf16.xpose.msra.mxu0 0
        %674 = vmatprep.subr.bf16.mxu0 0
        %675 = vmatpush1.bf16.xpose.msra.mxu0 0
        %676 = vmatprep.subr.bf16.mxu0 0
        %677 = vmatpush1.bf16.xpose.msra.mxu0 0
        %678 = vmatprep.mubr.bf16.mxu0 0
        %679 = vmatmul.mubr.bf16.gmra.mrb[0].mxu0 %v641
        %v680 = vpop.f32.mrb[0].mxu0
        %v681 = vadd.f32 %v385, %v680
        %v682 = vpop.f32.mrb[0].mxu0
        %v683 = vpop.f32.mrb[0].mxu0
        %v684 = vpop.f32.mrb[0].mxu0
        %685 = vdwg.mxu0
        %v686 = vsel %vm392, %v681, -inf
        %687 = vmax.xlane.f32.xlu0 %v686
        %v688 = vpop.xlane.xlu0 %687
        %v689 = vsub.f32 %v681, %v688
        %v690 = vmul.f32 %v689, 1.442695
        %v691 = vpow.pop %v690
        %v692 = vsel %vm392, %v691, 0.0
        %693 = vadd.xlane.f32.xlu0 %v692
        %v694 = vpop.xlane.xlu0 %693
        %v695 = vrcp.pop %v694
        %v696 = vmul.f32 %v691, %v695
        %s697 = scalar_lea.vmem %s292, 16 [#allocation9]
        %698 = vst.msk [vmem:[%s697] sm:$0xff] %vm392, %v696
        %v699 = vpack.c.bf16 %v696, %v696
        %700 = vrot.lane.b32.xlu0 %v637, 48
        %v701 = vpop.permute.xlu0 %700
        %v703 = vsel %vm392, %v699, 0
        %v706 = vsel %vm457, %v701, 0
        %708 = vmatprep.subr.bf16.mxu0 0
        %709 = vmatpush1.bf16.msra.mxu0 %v706
        %710 = vmatprep.subr.bf16.mxu0 0
        %711 = vmatpush1.bf16.msra.mxu0 0
        %712 = vmatprep.subr.bf16.mxu0 0
        %713 = vmatpush1.bf16.msra.mxu0 0
        %714 = vmatprep.subr.bf16.mxu0 0
        %715 = vmatpush1.bf16.msra.mxu0 0
        %716 = vmatprep.subr.bf16.mxu0 0
        %717 = vmatpush1.bf16.msra.mxu0 0
        %718 = vmatprep.subr.bf16.mxu0 0
        %719 = vmatpush1.bf16.msra.mxu0 0
        %720 = vmatprep.subr.bf16.mxu0 0
        %721 = vmatpush1.bf16.msra.mxu0 0
        %722 = vmatprep.subr.bf16.mxu0 0
        %723 = vmatpush1.bf16.msra.mxu0 0
        %724 = vmatprep.subr.bf16.mxu0 0
        %725 = vmatpush1.bf16.msra.mxu0 0
        %726 = vmatprep.subr.bf16.mxu0 0
        %727 = vmatpush1.bf16.msra.mxu0 0
        %728 = vmatprep.subr.bf16.mxu0 0
        %729 = vmatpush1.bf16.msra.mxu0 0
        %730 = vmatprep.subr.bf16.mxu0 0
        %731 = vmatpush1.bf16.msra.mxu0 0
        %732 = vmatprep.subr.bf16.mxu0 0
        %733 = vmatpush1.bf16.msra.mxu0 0
        %734 = vmatprep.subr.bf16.mxu0 0
        %735 = vmatpush1.bf16.msra.mxu0 0
        %736 = vmatprep.subr.bf16.mxu0 0
        %737 = vmatpush1.bf16.msra.mxu0 0
        %738 = vmatprep.subr.bf16.mxu0 0
        %739 = vmatpush1.bf16.msra.mxu0 0
        %740 = vmatprep.mubr.bf16.mxu0 0
        %741 = vmatmul.mubr.bf16.gmra.mrb[0].mxu0 %v703
        %v742 = vpop.f32.mrb[0].mxu0
        %v743 = vadd.f32 0.0, %v742
        %v744 = vpop.f32.mrb[0].mxu0
        %v745 = vpop.f32.mrb[0].mxu0
        %v746 = vpop.f32.mrb[0].mxu0
        %747 = vdwg.mxu0
        %749 = vrot.lane.b32.xlu0 %v743, 16
        %v750 = vpop.permute.xlu0 %749
        %vm752 = vcmask 195712
        %753 = vst.msk [vmem:[%s285] sm:$0xff] %vm752, %v750
        %v754 = vld [vmem:[%s378] sm:$0xf]
        %v755 = vld [vmem:[#allocation2] sm:$0xf]
        %v757 = vunpack.c.l.b16 %v754
        %v758 = vpack.c.b16 %v757, %v757
        %759 = vrot.lane.b32.xlu0 %v758, 104
        %v760 = vpop.permute.xlu0 %759
        %v762 = vunpack.c.l.b16 %v755
        %v763 = vpack.c.b16 %v762, %v762
        %764 = vrot.lane.b32.xlu0 %v763, 72
        %v765 = vpop.permute.xlu0 %764
        %v767 = vsel %vm392, %v760, 0
        %v770 = vsel %vm392, %v765, 0
        %772 = vmatprep.subr.bf16.mxu0 0
        %773 = vmatpush1.bf16.xpose.msra.mxu0 %v770
        %774 = vmatprep.subr.bf16.mxu0 0
        %775 = vmatpush1.bf16.xpose.msra.mxu0 0
        %776 = vmatprep.subr.bf16.mxu0 0
        %777 = vmatpush1.bf16.xpose.msra.mxu0 0
        %778 = vmatprep.subr.bf16.mxu0 0
        %779 = vmatpush1.bf16.xpose.msra.mxu0 0
        %780 = vmatprep.subr.bf16.mxu0 0
        %781 = vmatpush1.bf16.xpose.msra.mxu0 0
        %782 = vmatprep.subr.bf16.mxu0 0
        %783 = vmatpush1.bf16.xpose.msra.mxu0 0
        %784 = vmatprep.subr.bf16.mxu0 0
        %785 = vmatpush1.bf16.xpose.msra.mxu0 0
        %786 = vmatprep.subr.bf16.mxu0 0
        %787 = vmatpush1.bf16.xpose.msra.mxu0 0
        %788 = vmatprep.subr.bf16.mxu0 0
        %789 = vmatpush1.bf16.xpose.msra.mxu0 0
        %790 = vmatprep.subr.bf16.mxu0 0
        %791 = vmatpush1.bf16.xpose.msra.mxu0 0
        %792 = vmatprep.subr.bf16.mxu0 0
        %793 = vmatpush1.bf16.xpose.msra.mxu0 0
        %794 = vmatprep.subr.bf16.mxu0 0
        %795 = vmatpush1.bf16.xpose.msra.mxu0 0
        %796 = vmatprep.subr.bf16.mxu0 0
        %797 = vmatpush1.bf16.xpose.msra.mxu0 0
        %798 = vmatprep.subr.bf16.mxu0 0
        %799 = vmatpush1.bf16.xpose.msra.mxu0 0
        %800 = vmatprep.subr.bf16.mxu0 0
        %801 = vmatpush1.bf16.xpose.msra.mxu0 0
        %802 = vmatprep.subr.bf16.mxu0 0
        %803 = vmatpush1.bf16.xpose.msra.mxu0 0
        %804 = vmatprep.mubr.bf16.mxu0 0
        %805 = vmatmul.mubr.bf16.gmra.mrb[0].mxu0 %v767
        %v806 = vpop.f32.mrb[0].mxu0
        %v807 = vadd.f32 %v385, %v806
        %v808 = vpop.f32.mrb[0].mxu0
        %v809 = vpop.f32.mrb[0].mxu0
        %v810 = vpop.f32.mrb[0].mxu0
        %811 = vdwg.mxu0
        %v812 = vsel %vm392, %v807, -inf
        %813 = vmax.xlane.f32.xlu0 %v812
        %v814 = vpop.xlane.xlu0 %813
        %v815 = vsub.f32 %v807, %v814
        %v816 = vmul.f32 %v815, 1.442695
        %v817 = vpow.pop %v816
        %v818 = vsel %vm392, %v817, 0.0
        %819 = vadd.xlane.f32.xlu0 %v818
        %v820 = vpop.xlane.xlu0 %819
        %v821 = vrcp.pop %v820
        %v822 = vmul.f32 %v817, %v821
        %s823 = scalar_lea.vmem %s292, 24 [#allocation9]
        %824 = vst.msk [vmem:[%s823] sm:$0xff] %vm392, %v822
        %v825 = vpack.c.bf16 %v822, %v822
        %826 = vrot.lane.b32.xlu0 %v763, 40
        %v827 = vpop.permute.xlu0 %826
        %v829 = vsel %vm392, %v825, 0
        %v832 = vsel %vm457, %v827, 0
        %834 = vmatprep.subr.bf16.mxu0 0
        %835 = vmatpush1.bf16.msra.mxu0 %v832
        %836 = vmatprep.subr.bf16.mxu0 0
        %837 = vmatpush1.bf16.msra.mxu0 0
        %838 = vmatprep.subr.bf16.mxu0 0
        %839 = vmatpush1.bf16.msra.mxu0 0
        %840 = vmatprep.subr.bf16.mxu0 0
        %841 = vmatpush1.bf16.msra.mxu0 0
        %842 = vmatprep.subr.bf16.mxu0 0
        %843 = vmatpush1.bf16.msra.mxu0 0
        %844 = vmatprep.subr.bf16.mxu0 0
        %845 = vmatpush1.bf16.msra.mxu0 0
        %846 = vmatprep.subr.bf16.mxu0 0
        %847 = vmatpush1.bf16.msra.mxu0 0
        %848 = vmatprep.subr.bf16.mxu0 0
        %849 = vmatpush1.bf16.msra.mxu0 0
        %850 = vmatprep.subr.bf16.mxu0 0
        %851 = vmatpush1.bf16.msra.mxu0 0
        %852 = vmatprep.subr.bf16.mxu0 0
        %853 = vmatpush1.bf16.msra.mxu0 0
        %854 = vmatprep.subr.bf16.mxu0 0
        %855 = vmatpush1.bf16.msra.mxu0 0
        %856 = vmatprep.subr.bf16.mxu0 0
        %857 = vmatpush1.bf16.msra.mxu0 0
        %858 = vmatprep.subr.bf16.mxu0 0
        %859 = vmatpush1.bf16.msra.mxu0 0
        %860 = vmatprep.subr.bf16.mxu0 0
        %861 = vmatpush1.bf16.msra.mxu0 0
        %862 = vmatprep.subr.bf16.mxu0 0
        %863 = vmatpush1.bf16.msra.mxu0 0
        %864 = vmatprep.subr.bf16.mxu0 0
        %865 = vmatpush1.bf16.msra.mxu0 0
        %866 = vmatprep.mubr.bf16.mxu0 0
        %867 = vmatmul.mubr.bf16.gmra.mrb[0].mxu0 %v829
        %v868 = vpop.f32.mrb[0].mxu0
        %v869 = vadd.f32 0.0, %v868
        %v870 = vpop.f32.mrb[0].mxu0
        %v871 = vpop.f32.mrb[0].mxu0
        %v872 = vpop.f32.mrb[0].mxu0
        %873 = vdwg.mxu0
        %875 = vrot.lane.b32.xlu0 %v869, 24
        %v876 = vpop.permute.xlu0 %875
        %vm878 = vcmask 261312
        %879 = vst.msk [vmem:[%s285] sm:$0xff] %vm878, %v876
        %s880 = sand.u32 %s143, 1
        %s881 = scalar_lea.sflag [#allocation5], %s880
        %s882 = sand.u32 %s143, 1
        %s883 = smul.addr %s882, 8
        %s884 = scalar_lea.vmem [#allocation8], %s883
        %s885 = sand.u32 %s171, 1
        %s886 = scalar_lea.sflag [#allocation10], %s885
        %s887 = sand.u32 %s171, 1
        %s888 = smul.addr %s887, 32
        %s889 = scalar_lea.vmem [#allocation9], %s888
        // Predicated region
        $region49: #{tpu_custom_call.1} parent=35 // pred_check
          %p890 = pneg %p153
        $region50: #{tpu_custom_call.1} parent=35 // pred_check_branch
          %892 = sbr.rel (%p890) target = $region52
        $region51: #{tpu_custom_call.1} parent=35 // pred_region
          %s894 = ssub.s32 128, 128
          %895 = vsyncadd %s881, %s894
          %s896 = sadd.s32 %s32, %s31
          %s897 = smul.addr %s896, 128
          %s898 = scalar_lea.hbm %s4, %s897
          %s900 = sshll.u32 %s884, 4
          %s901 = int_to_ptr.vmem [resolvable:$true] %s900
          %903 = dma.vmem_to_hbm [thread:$0]  %s901, 128, %s898, %s881
        $region52: #{tpu_custom_call.1} parent=35 // pred_fallthru
          _
        // Predicated region
        $region53: #{tpu_custom_call.1} parent=35 // pred_check
          %p904 = pneg %p181
        $region54: #{tpu_custom_call.1} parent=35 // pred_check_branch
          %906 = sbr.rel (%p904) target = $region56
        $region55: #{tpu_custom_call.1} parent=35 // pred_region
          %s908 = ssub.s32 512, 512
          %909 = vsyncadd %s886, %s908
          %s910 = smul.addr %s31, 4
          %s911 = sadd.s32 %s32, %s910
          %s912 = smul.addr %s911, 128
          %s913 = scalar_lea.hbm %s5, %s912
          %s914 = sshll.u32 %s889, 4
          %s915 = int_to_ptr.vmem [resolvable:$true] %s914
          %920 = dma.vmem_to_hbm [thread:$0]  %s915, 512, %s913, %s886, 128, 128, 8
        $region56: #{tpu_custom_call.1} parent=35 // pred_fallthru
          _
      $region36: #{tpu_custom_call.1} parent=5 // pred_fallthru
        _
      %p921 = scmp.le.s32.totalorder 2, %s22
      // Predicated region
      $region57: #{tpu_custom_call.1} parent=5 // pred_check
        %p922 = pneg %p921
      $region58: #{tpu_custom_call.1} parent=5 // pred_check_branch
        %924 = sbr.rel (%p922) target = $region60
      $region59: #{tpu_custom_call.1} parent=5 // pred_region
        %s925 = ssub.s32 %s22, 2
        // Predicated region
        $region61: #{tpu_custom_call.1} parent=59 // pred_check
          %p926 = pneg %p159
        $region62: #{tpu_custom_call.1} parent=59 // pred_check_branch
          %928 = sbr.rel (%p926) target = $region64
        $region63: #{tpu_custom_call.1} parent=59 // pred_region
          %s929 = sand.u32 %s144, 1
          %s930 = scalar_lea.sflag [#allocation5], %s929
          %s931 = sand.u32 %s144, 1
          %s932 = smul.addr %s931, 8
          %s933 = scalar_lea.vmem [#allocation8], %s932
          %934 = dma.done %s930, 128
        $region64: #{tpu_custom_call.1} parent=59 // pred_fallthru
          _
        // Predicated region
        $region65: #{tpu_custom_call.1} parent=59 // pred_check
          %p935 = pneg %p187
        $region66: #{tpu_custom_call.1} parent=59 // pred_check_branch
          %937 = sbr.rel (%p935) target = $region68
        $region67: #{tpu_custom_call.1} parent=59 // pred_region
          %s938 = sand.u32 %s172, 1
          %s939 = scalar_lea.sflag [#allocation10], %s938
          %s940 = sand.u32 %s172, 1
          %s941 = smul.addr %s940, 32
          %s942 = scalar_lea.vmem [#allocation9], %s941
          %943 = dma.done %s939, 512
        $region68: #{tpu_custom_call.1} parent=59 // pred_fallthru
          _
      $region60: #{tpu_custom_call.1} parent=5 // pred_fallthru
        _
    $region6: #{tpu_custom_call.1} parent=1 // loop_footer
      %s26 = sadd.s32 1, %s22
    $region7: #{tpu_custom_call.1} parent=1 // loop_footer_branch
      %21 = sbr.rel target = $region3
    $region8: #{tpu_custom_call.1} parent=1 // loop_exit
      _
    %944 = vsyncpa [#allocation4], 1
    %s945 = scalar_lea.sflag [#allocation4], 1
    %946 = vsyncpa %s945, 1
    %947 = vsyncpa [#allocation7], 1
    %948 = vsyncpa [#allocation5], 1
    %s949 = scalar_lea.sflag [#allocation5], 1
    %950 = vsyncpa %s949, 1
    %951 = vsyncpa [#allocation10], 1
    %s952 = scalar_lea.sflag [#allocation10], 1
    %953 = vsyncpa %s952, 1

</llo_original>
